<compile_context>
chip_gen: v7x
topology: tpu7x:2x2x1
jax: 0.10.0
libtpu: 0.0.40
codegen_flags: <defaults>
</compile_context>

<pallas_src>
import functools

import jax
import jax.numpy as jnp
import numpy as np
from jax.experimental import pallas as pl
from jax.experimental.pallas import tpu as pltpu


def _round_up(n, m):
    return ((n + m - 1) // m) * m


# ---------------------------------------------------------------------------
# Fused kernel: mix params (SMEM scalar coefficients, beta folded in) + MLP forward
#   scal_ref : SMEM (4*n_models + 1,)  = [alpha[0,:], alpha[1,:], alpha[2,:], alpha[3,:], beta]
#   x_ref    : VMEM (B, D)
#   w1s_ref  : VMEM (n_models, D,  Hp)
#   b1s_ref  : VMEM (n_models, 1,  Hp)
#   w2s_ref  : VMEM (n_models, Hp, Cp)
#   b2s_ref  : VMEM (n_models, 1,  Cp)
#   o_ref    : VMEM (B, Cp)            (lane-dense, Cp multiple of 128)
# ---------------------------------------------------------------------------
def _fused_alpha_mlp_kernel(scal_ref, x_ref, w1s_ref, b1s_ref, w2s_ref, b2s_ref,
                            o_ref, *, n_models):
    beta = scal_ref[4 * n_models]

    def mix(stacked_ref, row, scale=None):
        # sum_k coeff_k * param_k   (n_models is tiny -> static unrolled loop)
        acc = None
        for k in range(n_models):
            c = scal_ref[row * n_models + k]
            if scale is not None:
                c = c * scale              # fold beta into the coefficient (scalar op, free)
            term = c * stacked_ref[k].astype(jnp.float32)
            acc = term if acc is None else acc + term
        return acc

    w1 = mix(w1s_ref, 0)                   # (D, Hp)
    b1 = mix(b1s_ref, 1)                   # (1, Hp)
    w2 = mix(w2s_ref, 2, scale=beta)       # (Hp, Cp), beta folded in
    b2 = mix(b2s_ref, 3, scale=beta)       # (1, Cp),  beta folded in

    h = jnp.dot(x_ref[...], w1, preferred_element_type=jnp.float32) + b1
    h = jnp.maximum(h, 0.0)
    y = jnp.dot(h, w2, preferred_element_type=jnp.float32) + b2
    o_ref[...] = y.astype(o_ref.dtype)


@functools.partial(jax.jit, static_argnames=("n_models", "c_out"))
def _forward(x, alpha_raw, beta, w1s, b1s, w2s, b2s, *, n_models, c_out):
    # softmax of a (4, n_models) array: tiny, fused/constant-folded by XLA — no kernel.
    alph = jax.nn.softmax(alpha_raw, axis=1)
    scal = jnp.concatenate(
        [alph.reshape(-1), jnp.reshape(beta, (1,))]).astype(jnp.float32)

    B = x.shape[0]
    Cp = w2s.shape[2]
    kernel = functools.partial(_fused_alpha_mlp_kernel, n_models=n_models)

    out_padded = pl.pallas_call(
        kernel,
        out_shape=jax.ShapeDtypeStruct((B, Cp), jnp.float32),
        in_specs=[
            pl.BlockSpec(memory_space=pltpu.MemorySpace.SMEM),   # alpha + beta scalars
            pl.BlockSpec(memory_space=pltpu.MemorySpace.VMEM),   # x
            pl.BlockSpec(memory_space=pltpu.MemorySpace.VMEM),   # stacked W1
            pl.BlockSpec(memory_space=pltpu.MemorySpace.VMEM),   # stacked b1
            pl.BlockSpec(memory_space=pltpu.MemorySpace.VMEM),   # stacked W2
            pl.BlockSpec(memory_space=pltpu.MemorySpace.VMEM),   # stacked b2
        ],
        out_specs=pl.BlockSpec(memory_space=pltpu.MemorySpace.VMEM),
    )(scal, x.astype(jnp.float32), w1s, b1s, w2s, b2s)

    return out_padded[:, :c_out]


# ---------------------------------------------------------------------------
# AlphaWrapper equivalent
# ---------------------------------------------------------------------------
class AlphaWrapperPallas:
    def __init__(self, paramslist):
        # paramslist: list over models; each entry is a tuple (W1, b1, W2, b2)
        n_models = len(paramslist)
        n_params = len(paramslist[0])
        assert n_params == 4, "MLP instantiation expects (W1, b1, W2, b2) per model"
        w1_list, b1_list, w2_list, b2_list = zip(*paramslist)

        D, H = w1_list[0].shape
        _, C = w2_list[0].shape
        Hp = _round_up(H, 128)
        Cp = _round_up(C, 128)
        self.n_models, self.C = n_models, C

        # Stack per-model params once and zero-pad feature dims to lane-dense multiples
        # of 128.  Exact: padded hidden units give relu(0+0)=0 and hit zero W2 rows;
        # padded output columns are sliced off in the wrapper.
        self.w1s = (jnp.zeros((n_models, D, Hp), jnp.float32)
                    .at[:, :, :H].set(jnp.stack(w1_list).astype(jnp.float32)))
        self.b1s = (jnp.zeros((n_models, 1, Hp), jnp.float32)
                    .at[:, :, :H].set(jnp.stack([b.reshape(1, H) for b in b1_list])
                                      .astype(jnp.float32)))
        self.w2s = (jnp.zeros((n_models, Hp, Cp), jnp.float32)
                    .at[:, :H, :C].set(jnp.stack(w2_list).astype(jnp.float32)))
        self.b2s = (jnp.zeros((n_models, 1, Cp), jnp.float32)
                    .at[:, :, :C].set(jnp.stack([b.reshape(1, C) for b in b2_list])
                                      .astype(jnp.float32)))

        # Matches torch init: alpha_raw = softmax(ones, dim=1)  (uniform rows)
        self.alpha_raw = jax.nn.softmax(
            jnp.ones((n_params, n_models), jnp.float32), axis=1)
        self.beta = jnp.float32(1.0)

    def alpha(self):
        return jax.nn.softmax(self.alpha_raw, axis=1)

    def __call__(self, x):
        return _forward(x, self.alpha_raw, self.beta,
                        self.w1s, self.b1s, self.w2s, self.b2s,
                        n_models=self.n_models, c_out=self.C)


# ---------------------------------------------------------------------------
# Pure-JAX reference (matches the torch module, incl. the double softmax)
# ---------------------------------------------------------------------------
def reference_forward(paramslist, x):
    n_params = len(paramslist[0])
    n_models = len(paramslist)
    alpha_raw = jax.nn.softmax(jnp.ones((n_params, n_models), jnp.float32), axis=1)
    alph = jax.nn.softmax(alpha_raw, axis=1)
    mixed = []
    for j, p_versions in enumerate(zip(*paramslist)):
        stacked = jnp.stack(p_versions, axis=0)
        w = alph[j].reshape((n_models,) + (1,) * (stacked.ndim - 1))
        mixed.append(jnp.sum(stacked * w, axis=0))
    w1, b1, w2, b2 = mixed
    h = jnp.maximum(x @ w1 + b1, 0.0)
    return 1.0 * (h @ w2 + b2)


if __name__ == "__main__":
    B, D, H, C = 8, 32, 64, 16   # batch, in-features, hidden, out-features
    n_models = 3

    key = jax.random.PRNGKey(0)
    paramslist = []
    for _ in range(n_models):
        key, k1, k2, k3, k4 = jax.random.split(key, 5)
        w1 = jax.random.normal(k1, (D, H), jnp.float32) * 0.1
        b1 = jax.random.normal(k2, (1, H), jnp.float32) * 0.1
        w2 = jax.random.normal(k3, (H, C), jnp.float32) * 0.1
        b2 = jax.random.normal(k4, (1, C), jnp.float32) * 0.1
        paramslist.append((w1, b1, w2, b2))

    key, kx = jax.random.split(key)
    x = jax.random.normal(kx, (B, D), jnp.float32)

    wrapper = AlphaWrapperPallas(paramslist)
    out = jax.block_until_ready(wrapper(x))

    ref = jax.block_until_ready(reference_forward(paramslist, x))
    assert out.shape == (B, C)
    assert np.allclose(np.asarray(out), np.asarray(ref), rtol=1e-5, atol=1e-5)

    print("KERNEL_OK")
</pallas_src>

<mosaic_0001>
module attributes {stable_mosaic.version = 11 : i64} {
  func.func @_fused_alpha_mlp_kernel(%arg0: memref<13xf32, #tpu.memory_space<smem>>, %arg1: memref<8x32xf32, #tpu.memory_space<vmem>>, %arg2: memref<3x32x128xf32, #tpu.memory_space<vmem>>, %arg3: memref<3x1x128xf32, #tpu.memory_space<vmem>>, %arg4: memref<3x128x128xf32, #tpu.memory_space<vmem>>, %arg5: memref<3x1x128xf32, #tpu.memory_space<vmem>>, %arg6: memref<8x128xf32, #tpu.memory_space<vmem>>) attributes {dimension_semantics = [], scalar_prefetch = 0 : i64, scratch_operands = 0 : i64, tpu.core_type = #tpu.core_type<tc>} {
    %c12 = arith.constant 12 : index
    %0 = memref.load %arg0[%c12] : memref<13xf32, #tpu.memory_space<smem>>
    %c0 = arith.constant 0 : index
    %1 = memref.load %arg0[%c0] : memref<13xf32, #tpu.memory_space<smem>>
    %c0_0 = arith.constant 0 : index
    %c0_1 = arith.constant 0 : index
    %c0_2 = arith.constant 0 : index
    %2 = vector.load %arg2[%c0_0, %c0_1, %c0_2] : memref<3x32x128xf32, #tpu.memory_space<vmem>>, vector<1x32x128xf32>
    %3 = vector.shape_cast %2 : vector<1x32x128xf32> to vector<32x128xf32>
    %4 = vector.broadcast %1 : f32 to vector<32x128xf32>
    %5 = arith.mulf %4, %3 : vector<32x128xf32>
    %c1 = arith.constant 1 : index
    %6 = memref.load %arg0[%c1] : memref<13xf32, #tpu.memory_space<smem>>
    %c1_3 = arith.constant 1 : index
    %c0_4 = arith.constant 0 : index
    %c0_5 = arith.constant 0 : index
    %7 = vector.load %arg2[%c1_3, %c0_4, %c0_5] : memref<3x32x128xf32, #tpu.memory_space<vmem>>, vector<1x32x128xf32>
    %8 = vector.shape_cast %7 : vector<1x32x128xf32> to vector<32x128xf32>
    %9 = vector.broadcast %6 : f32 to vector<32x128xf32>
    %10 = arith.mulf %9, %8 : vector<32x128xf32>
    %11 = arith.addf %5, %10 : vector<32x128xf32>
    %c2 = arith.constant 2 : index
    %12 = memref.load %arg0[%c2] : memref<13xf32, #tpu.memory_space<smem>>
    %c2_6 = arith.constant 2 : index
    %c0_7 = arith.constant 0 : index
    %c0_8 = arith.constant 0 : index
    %13 = vector.load %arg2[%c2_6, %c0_7, %c0_8] : memref<3x32x128xf32, #tpu.memory_space<vmem>>, vector<1x32x128xf32>
    %14 = vector.shape_cast %13 : vector<1x32x128xf32> to vector<32x128xf32>
    %15 = vector.broadcast %12 : f32 to vector<32x128xf32>
    %16 = arith.mulf %15, %14 : vector<32x128xf32>
    %17 = arith.addf %11, %16 : vector<32x128xf32>
    %c3 = arith.constant 3 : index
    %18 = memref.load %arg0[%c3] : memref<13xf32, #tpu.memory_space<smem>>
    %c0_9 = arith.constant 0 : index
    %c0_10 = arith.constant 0 : index
    %c0_11 = arith.constant 0 : index
    %19 = vector.load %arg3[%c0_9, %c0_10, %c0_11] : memref<3x1x128xf32, #tpu.memory_space<vmem>>, vector<1x1x128xf32>
    %20 = vector.shape_cast %19 : vector<1x1x128xf32> to vector<1x128xf32>
    %21 = vector.broadcast %18 : f32 to vector<1x128xf32>
    %22 = arith.mulf %21, %20 : vector<1x128xf32>
    %c4 = arith.constant 4 : index
    %23 = memref.load %arg0[%c4] : memref<13xf32, #tpu.memory_space<smem>>
    %c1_12 = arith.constant 1 : index
    %c0_13 = arith.constant 0 : index
    %c0_14 = arith.constant 0 : index
    %24 = vector.load %arg3[%c1_12, %c0_13, %c0_14] : memref<3x1x128xf32, #tpu.memory_space<vmem>>, vector<1x1x128xf32>
    %25 = vector.shape_cast %24 : vector<1x1x128xf32> to vector<1x128xf32>
    %26 = vector.broadcast %23 : f32 to vector<1x128xf32>
    %27 = arith.mulf %26, %25 : vector<1x128xf32>
    %28 = arith.addf %22, %27 : vector<1x128xf32>
    %c5 = arith.constant 5 : index
    %29 = memref.load %arg0[%c5] : memref<13xf32, #tpu.memory_space<smem>>
    %c2_15 = arith.constant 2 : index
    %c0_16 = arith.constant 0 : index
    %c0_17 = arith.constant 0 : index
    %30 = vector.load %arg3[%c2_15, %c0_16, %c0_17] : memref<3x1x128xf32, #tpu.memory_space<vmem>>, vector<1x1x128xf32>
    %31 = vector.shape_cast %30 : vector<1x1x128xf32> to vector<1x128xf32>
    %32 = vector.broadcast %29 : f32 to vector<1x128xf32>
    %33 = arith.mulf %32, %31 : vector<1x128xf32>
    %34 = arith.addf %28, %33 : vector<1x128xf32>
    %c6 = arith.constant 6 : index
    %35 = memref.load %arg0[%c6] : memref<13xf32, #tpu.memory_space<smem>>
    %36 = arith.mulf %35, %0 : f32
    %c0_18 = arith.constant 0 : index
    %c0_19 = arith.constant 0 : index
    %c0_20 = arith.constant 0 : index
    %37 = vector.load %arg4[%c0_18, %c0_19, %c0_20] : memref<3x128x128xf32, #tpu.memory_space<vmem>>, vector<1x128x128xf32>
    %38 = vector.shape_cast %37 : vector<1x128x128xf32> to vector<128x128xf32>
    %39 = vector.broadcast %36 : f32 to vector<128x128xf32>
    %40 = arith.mulf %39, %38 : vector<128x128xf32>
    %c7 = arith.constant 7 : index
    %41 = memref.load %arg0[%c7] : memref<13xf32, #tpu.memory_space<smem>>
    %42 = arith.mulf %41, %0 : f32
    %c1_21 = arith.constant 1 : index
    %c0_22 = arith.constant 0 : index
    %c0_23 = arith.constant 0 : index
    %43 = vector.load %arg4[%c1_21, %c0_22, %c0_23] : memref<3x128x128xf32, #tpu.memory_space<vmem>>, vector<1x128x128xf32>
    %44 = vector.shape_cast %43 : vector<1x128x128xf32> to vector<128x128xf32>
    %45 = vector.broadcast %42 : f32 to vector<128x128xf32>
    %46 = arith.mulf %45, %44 : vector<128x128xf32>
    %47 = arith.addf %40, %46 : vector<128x128xf32>
    %c8 = arith.constant 8 : index
    %48 = memref.load %arg0[%c8] : memref<13xf32, #tpu.memory_space<smem>>
    %49 = arith.mulf %48, %0 : f32
    %c2_24 = arith.constant 2 : index
    %c0_25 = arith.constant 0 : index
    %c0_26 = arith.constant 0 : index
    %50 = vector.load %arg4[%c2_24, %c0_25, %c0_26] : memref<3x128x128xf32, #tpu.memory_space<vmem>>, vector<1x128x128xf32>
    %51 = vector.shape_cast %50 : vector<1x128x128xf32> to vector<128x128xf32>
    %52 = vector.broadcast %49 : f32 to vector<128x128xf32>
    %53 = arith.mulf %52, %51 : vector<128x128xf32>
    %54 = arith.addf %47, %53 : vector<128x128xf32>
    %c9 = arith.constant 9 : index
    %55 = memref.load %arg0[%c9] : memref<13xf32, #tpu.memory_space<smem>>
    %56 = arith.mulf %55, %0 : f32
    %c0_27 = arith.constant 0 : index
    %c0_28 = arith.constant 0 : index
    %c0_29 = arith.constant 0 : index
    %57 = vector.load %arg5[%c0_27, %c0_28, %c0_29] : memref<3x1x128xf32, #tpu.memory_space<vmem>>, vector<1x1x128xf32>
    %58 = vector.shape_cast %57 : vector<1x1x128xf32> to vector<1x128xf32>
    %59 = vector.broadcast %56 : f32 to vector<1x128xf32>
    %60 = arith.mulf %59, %58 : vector<1x128xf32>
    %c10 = arith.constant 10 : index
    %61 = memref.load %arg0[%c10] : memref<13xf32, #tpu.memory_space<smem>>
    %62 = arith.mulf %61, %0 : f32
    %c1_30 = arith.constant 1 : index
    %c0_31 = arith.constant 0 : index
    %c0_32 = arith.constant 0 : index
    %63 = vector.load %arg5[%c1_30, %c0_31, %c0_32] : memref<3x1x128xf32, #tpu.memory_space<vmem>>, vector<1x1x128xf32>
    %64 = vector.shape_cast %63 : vector<1x1x128xf32> to vector<1x128xf32>
    %65 = vector.broadcast %62 : f32 to vector<1x128xf32>
    %66 = arith.mulf %65, %64 : vector<1x128xf32>
    %67 = arith.addf %60, %66 : vector<1x128xf32>
    %c11 = arith.constant 11 : index
    %68 = memref.load %arg0[%c11] : memref<13xf32, #tpu.memory_space<smem>>
    %69 = arith.mulf %68, %0 : f32
    %c2_33 = arith.constant 2 : index
    %c0_34 = arith.constant 0 : index
    %c0_35 = arith.constant 0 : index
    %70 = vector.load %arg5[%c2_33, %c0_34, %c0_35] : memref<3x1x128xf32, #tpu.memory_space<vmem>>, vector<1x1x128xf32>
    %71 = vector.shape_cast %70 : vector<1x1x128xf32> to vector<1x128xf32>
    %72 = vector.broadcast %69 : f32 to vector<1x128xf32>
    %73 = arith.mulf %72, %71 : vector<1x128xf32>
    %74 = arith.addf %67, %73 : vector<1x128xf32>
    %c0_36 = arith.constant 0 : index
    %c0_37 = arith.constant 0 : index
    %75 = vector.load %arg1[%c0_36, %c0_37] : memref<8x32xf32, #tpu.memory_space<vmem>>, vector<8x32xf32>
    %cst = arith.constant dense<0.000000e+00> : vector<8x128xf32>
    %76 = tpu.matmul %75, %17, %cst {dimension_numbers = #tpu.dot_dimension_numbers<[1], [0], [0], [1], [0, 0, 1, 1], [], []>} : vector<8x32xf32>, vector<32x128xf32>, vector<8x128xf32> -> vector<8x128xf32>
    %77 = vector.broadcast %34 : vector<1x128xf32> to vector<8x128xf32>
    %78 = arith.addf %76, %77 : vector<8x128xf32>
    %cst_38 = arith.constant 0.000000e+00 : f32
    %79 = vector.broadcast %cst_38 : f32 to vector<8x128xf32>
    %80 = arith.maximumf %78, %79 : vector<8x128xf32>
    %cst_39 = arith.constant dense<0.000000e+00> : vector<8x128xf32>
    %81 = tpu.matmul %80, %54, %cst_39 {dimension_numbers = #tpu.dot_dimension_numbers<[1], [0], [0], [1], [0, 0, 1, 1], [], []>} : vector<8x128xf32>, vector<128x128xf32>, vector<8x128xf32> -> vector<8x128xf32>
    %82 = vector.broadcast %74 : vector<1x128xf32> to vector<8x128xf32>
    %83 = arith.addf %81, %82 : vector<8x128xf32>
    %c0_40 = arith.constant 0 : index
    %c0_41 = arith.constant 0 : index
    %84 = vector.load %arg6[%c0_40, %c0_41] : memref<8x128xf32, #tpu.memory_space<vmem>>, vector<8x128xf32>
    tpu.vector_store %arg6[%c0_40, %c0_41], %83 {strides = array<i32>} : memref<8x128xf32, #tpu.memory_space<vmem>>, vector<8x128xf32>,
    return
  }
}

</mosaic_0001>

<llo_original>
// kernel: _forward.1
$region0: #{_forward.1}
  #allocation0 [shape = 'u32[]', space=smem, size = 0x4, offset = 0x4, fixed_abs, tag = 'smem constant byte address 0x4 - core index']
  #allocation1 [shape = 'u32[144,128]{1,0:T(1,128)}', space=vmem, size = 0x12000, scoped, tag = 'internal scratch']
  %s0 = inlined_call_operand.vmem [shape: f32[13], index: 0, kind: input, shape index: {}]
  %s1 = inlined_call_operand.vmem [shape: f32[8,32], index: 1, kind: input, shape index: {}]
  %s2 = inlined_call_operand.hbm [shape: f32[3,32,128], index: 2, kind: input, shape index: {}]
  %s3 = inlined_call_operand.vmem [shape: f32[3,1,128], index: 3, kind: input, shape index: {}]
  %s4 = inlined_call_operand.hbm [shape: f32[3,128,128], index: 4, kind: input, shape index: {}]
  %s5 = inlined_call_operand.vmem [shape: f32[3,1,128], index: 5, kind: input, shape index: {}]
  %s6 = inlined_call_operand.hbm [shape: f32[8,128], index: 6, kind: output, shape index: {}]
  %s7 = sld [smem:[#allocation0]]
  $region46: #{_forward.1} parent=0
    _
  %s9 = ssub.s32 1, %s7
  %s10 = scalar_select 0, %s9, %s7
  $region1: #{_forward.1} parent=0
    #allocation2 [shape = 'u8[512]{0}', space=smem, size = 0x200, scoped, tag = 'input window, operand 0, single buffered']
    #allocation3 [shape = 's32[1]{0}', space=sflag, size = 0x4, scoped, tag = 'scoped memory for _forward.1']
    #allocation4 [shape = 's32[1]{0}', space=sflag, size = 0x4, scoped, tag = 'scoped memory for _forward.1']
    #allocation5 [shape = 's32[1]{0}', space=sflag, size = 0x4, scoped, tag = 'scoped memory for _forward.1']
    #allocation6 [shape = 'u8[49152]{0}', space=vmem, size = 0xc000, scoped, tag = 'input window, operand 2, single buffered']
    #allocation7 [shape = 'u8[196608]{0}', space=vmem, size = 0x30000, scoped, tag = 'input window, operand 4, single buffered']
    #allocation8 [shape = 's32[1]{0}', space=sflag, size = 0x4, scoped, tag = 'scoped memory for _forward.1']
    #allocation9 [shape = 'u8[4096]{0}', space=vmem, size = 0x1000, scoped, tag = 'output window, operand 0, single buffered']
    %11 = vsyncpa [#allocation5], 0
    %12 = vsyncpa [#allocation3], 0
    %13 = vsyncpa [#allocation8], 0
    %14 = vsyncpa [#allocation4], 0
    // Predicated region
    $region2: #{_forward.1} parent=1 // pred_check
      _
    $region3: #{_forward.1} parent=1 // pred_check_branch
      %16 = sbr.rel (0) target = $region5
    $region4: #{_forward.1} parent=1 // pred_region
      %s18 = ssub.s32 16, 16
      %19 = vsyncadd [#allocation5], %s18
      %s21 = sshll.u32 %s0, 4
      %s22 = int_to_ptr.vmem [resolvable:$true] %s21
      %24 = dma.vmem_to_smem %s22, 16, [#allocation2], [#allocation5]
    $region5: #{_forward.1} parent=1 // pred_fallthru
      _
    // Predicated region
    $region6: #{_forward.1} parent=1 // pred_check
      _
    $region7: #{_forward.1} parent=1 // pred_check_branch
      %26 = sbr.rel (0) target = $region9
    $region8: #{_forward.1} parent=1 // pred_region
      _
    $region9: #{_forward.1} parent=1 // pred_fallthru
      _
    // Predicated region
    $region10: #{_forward.1} parent=1 // pred_check
      _
    $region11: #{_forward.1} parent=1 // pred_check_branch
      %28 = sbr.rel (0) target = $region13
    $region12: #{_forward.1} parent=1 // pred_region
      %s30 = ssub.s32 1536, 1536
      %31 = vsyncadd [#allocation3], %s30
      %s32 = sshll.u32 [#allocation6], 4
      %s33 = int_to_ptr.vmem [resolvable:$true] %s32
      %38 = dma.hbm_to_vmem [thread:$0]  %s2, 1536, %s33, [#allocation3], 128, 128, 8
    $region13: #{_forward.1} parent=1 // pred_fallthru
      _
    // Predicated region
    $region14: #{_forward.1} parent=1 // pred_check
      _
    $region15: #{_forward.1} parent=1 // pred_check_branch
      %40 = sbr.rel (0) target = $region17
    $region16: #{_forward.1} parent=1 // pred_region
      _
    $region17: #{_forward.1} parent=1 // pred_fallthru
      _
    // Predicated region
    $region18: #{_forward.1} parent=1 // pred_check
      _
    $region19: #{_forward.1} parent=1 // pred_check_branch
      %42 = sbr.rel (0) target = $region21
    $region20: #{_forward.1} parent=1 // pred_region
      %s44 = ssub.s32 6144, 6144
      %45 = vsyncadd [#allocation8], %s44
      %s46 = sshll.u32 [#allocation7], 4
      %s47 = int_to_ptr.vmem [resolvable:$true] %s46
      %52 = dma.hbm_to_vmem [thread:$0]  %s4, 6144, %s47, [#allocation8], 128, 128, 8
    $region21: #{_forward.1} parent=1 // pred_fallthru
      _
    // Predicated region
    $region22: #{_forward.1} parent=1 // pred_check
      _
    $region23: #{_forward.1} parent=1 // pred_check_branch
      %54 = sbr.rel (0) target = $region25
    $region24: #{_forward.1} parent=1 // pred_region
      _
    $region25: #{_forward.1} parent=1 // pred_fallthru
      _
    // Predicated region
    $region26: #{_forward.1} parent=1 // pred_check
      _
    $region27: #{_forward.1} parent=1 // pred_check_branch
      %56 = sbr.rel (0) target = $region29
    $region28: #{_forward.1} parent=1 // pred_region
      %57 = dma.done [#allocation5], 16
    $region29: #{_forward.1} parent=1 // pred_fallthru
      _
    // Predicated region
    $region30: #{_forward.1} parent=1 // pred_check
      _
    $region31: #{_forward.1} parent=1 // pred_check_branch
      %59 = sbr.rel (0) target = $region33
    $region32: #{_forward.1} parent=1 // pred_region
      %60 = dma.done [#allocation3], 1536
    $region33: #{_forward.1} parent=1 // pred_fallthru
      _
    // Predicated region
    $region34: #{_forward.1} parent=1 // pred_check
      _
    $region35: #{_forward.1} parent=1 // pred_check_branch
      %62 = sbr.rel (0) target = $region37
    $region36: #{_forward.1} parent=1 // pred_region
      %63 = dma.done [#allocation8], 6144
    $region37: #{_forward.1} parent=1 // pred_fallthru
      _
    %64 = sfence
    %s65 = sld [smem:[#allocation2 + $0xc]]
    %s66 = sld [smem:[#allocation2]]
    %v67 = vld [vmem:[#allocation6] sm:$0xff]
    %v68 = vld [vmem:[#allocation6 + $0x8] sm:$0xff]
    %v69 = vld [vmem:[#allocation6 + $0x10] sm:$0xff]
    %v70 = vld [vmem:[#allocation6 + $0x18] sm:$0xff]
    %v71 = vstv %s66
    %v72 = vmul.f32 %v71, %v67
    %v73 = vmul.f32 %v71, %v68
    %v74 = vmul.f32 %v71, %v69
    %v75 = vmul.f32 %v71, %v70
    %s76 = sld [smem:[#allocation2 + $0x1]]
    %s77 = scalar_lea.vmem [#allocation6], 32
    %v78 = vld [vmem:[%s77] sm:$0xff]
    %v79 = vld [vmem:[%s77 + $0x8] sm:$0xff]
    %v80 = vld [vmem:[%s77 + $0x10] sm:$0xff]
    %v81 = vld [vmem:[%s77 + $0x18] sm:$0xff]
    %v82 = vstv %s76
    %v83 = vmul.f32 %v82, %v78
    %v84 = vmul.f32 %v82, %v79
    %v85 = vmul.f32 %v82, %v80
    %v86 = vmul.f32 %v82, %v81
    %v87 = vadd.f32 %v72, %v83
    %v88 = vadd.f32 %v73, %v84
    %v89 = vadd.f32 %v74, %v85
    %v90 = vadd.f32 %v75, %v86
    %s91 = sld [smem:[#allocation2 + $0x2]]
    %s92 = scalar_lea.vmem [#allocation6], 64
    %v93 = vld [vmem:[%s92] sm:$0xff]
    %v94 = vld [vmem:[%s92 + $0x8] sm:$0xff]
    %v95 = vld [vmem:[%s92 + $0x10] sm:$0xff]
    %v96 = vld [vmem:[%s92 + $0x18] sm:$0xff]
    %v97 = vstv %s91
    %v98 = vmul.f32 %v97, %v93
    %v99 = vmul.f32 %v97, %v94
    %v100 = vmul.f32 %v97, %v95
    %v101 = vmul.f32 %v97, %v96
    %v102 = vadd.f32 %v87, %v98
    %v103 = vadd.f32 %v88, %v99
    %v104 = vadd.f32 %v89, %v100
    %v105 = vadd.f32 %v90, %v101
    %s106 = sld [smem:[#allocation2 + $0x3]]
    %v107 = vld [vmem:[%s3] sm:$0x1]
    %v108 = vstv %s106
    %v109 = vmul.f32 %v108, %v107
    %s110 = sld [smem:[#allocation2 + $0x4]]
    %s111 = scalar_lea.vmem %s3, 1
    %v112 = vld [vmem:[%s111] sm:$0x1]
    %v113 = vstv %s110
    %v114 = vmul.f32 %v113, %v112
    %v115 = vadd.f32 %v109, %v114
    %s116 = sld [smem:[#allocation2 + $0x5]]
    %s117 = scalar_lea.vmem %s3, 2
    %v118 = vld [vmem:[%s117] sm:$0x1]
    %v119 = vstv %s116
    %v120 = vmul.f32 %v119, %v118
    %v121 = vadd.f32 %v115, %v120
    %s122 = sld [smem:[#allocation2 + $0x6]]
    %s123 = smul.f32 %s122, %s65
    %v124 = vld [vmem:[#allocation7] sm:$0xff]
    %v125 = vld [vmem:[#allocation7 + $0x8] sm:$0xff]
    %v126 = vld [vmem:[#allocation7 + $0x10] sm:$0xff]
    %v127 = vld [vmem:[#allocation7 + $0x18] sm:$0xff]
    %v128 = vld [vmem:[#allocation7 + $0x20] sm:$0xff]
    %v129 = vld [vmem:[#allocation7 + $0x28] sm:$0xff]
    %v130 = vld [vmem:[#allocation7 + $0x30] sm:$0xff]
    %v131 = vld [vmem:[#allocation7 + $0x38] sm:$0xff]
    %v132 = vld [vmem:[#allocation7 + $0x40] sm:$0xff]
    %v133 = vld [vmem:[#allocation7 + $0x48] sm:$0xff]
    %v134 = vld [vmem:[#allocation7 + $0x50] sm:$0xff]
    %v135 = vld [vmem:[#allocation7 + $0x58] sm:$0xff]
    %v136 = vld [vmem:[#allocation7 + $0x60] sm:$0xff]
    %v137 = vld [vmem:[#allocation7 + $0x68] sm:$0xff]
    %v138 = vld [vmem:[#allocation7 + $0x70] sm:$0xff]
    %v139 = vld [vmem:[#allocation7 + $0x78] sm:$0xff]
    %v140 = vstv %s123
    %v141 = vmul.f32 %v140, %v124
    %v142 = vmul.f32 %v140, %v125
    %v143 = vmul.f32 %v140, %v126
    %v144 = vmul.f32 %v140, %v127
    %v145 = vmul.f32 %v140, %v128
    %v146 = vmul.f32 %v140, %v129
    %v147 = vmul.f32 %v140, %v130
    %v148 = vmul.f32 %v140, %v131
    %v149 = vmul.f32 %v140, %v132
    %v150 = vmul.f32 %v140, %v133
    %v151 = vmul.f32 %v140, %v134
    %v152 = vmul.f32 %v140, %v135
    %v153 = vmul.f32 %v140, %v136
    %v154 = vmul.f32 %v140, %v137
    %v155 = vmul.f32 %v140, %v138
    %v156 = vmul.f32 %v140, %v139
    %s157 = sld [smem:[#allocation2 + $0x7]]
    %s158 = smul.f32 %s157, %s65
    %s159 = scalar_lea.vmem [#allocation7], 128
    %v160 = vld [vmem:[%s159] sm:$0xff]
    %v161 = vld [vmem:[%s159 + $0x8] sm:$0xff]
    %v162 = vld [vmem:[%s159 + $0x10] sm:$0xff]
    %v163 = vld [vmem:[%s159 + $0x18] sm:$0xff]
    %v164 = vld [vmem:[%s159 + $0x20] sm:$0xff]
    %v165 = vld [vmem:[%s159 + $0x28] sm:$0xff]
    %v166 = vld [vmem:[%s159 + $0x30] sm:$0xff]
    %v167 = vld [vmem:[%s159 + $0x38] sm:$0xff]
    %v168 = vld [vmem:[%s159 + $0x40] sm:$0xff]
    %v169 = vld [vmem:[%s159 + $0x48] sm:$0xff]
    %v170 = vld [vmem:[%s159 + $0x50] sm:$0xff]
    %v171 = vld [vmem:[%s159 + $0x58] sm:$0xff]
    %v172 = vld [vmem:[%s159 + $0x60] sm:$0xff]
    %v173 = vld [vmem:[%s159 + $0x68] sm:$0xff]
    %v174 = vld [vmem:[%s159 + $0x70] sm:$0xff]
    %v175 = vld [vmem:[%s159 + $0x78] sm:$0xff]
    %v176 = vstv %s158
    %v177 = vmul.f32 %v176, %v160
    %v178 = vmul.f32 %v176, %v161
    %v179 = vmul.f32 %v176, %v162
    %v180 = vmul.f32 %v176, %v163
    %v181 = vmul.f32 %v176, %v164
    %v182 = vmul.f32 %v176, %v165
    %v183 = vmul.f32 %v176, %v166
    %v184 = vmul.f32 %v176, %v167
    %v185 = vmul.f32 %v176, %v168
    %v186 = vmul.f32 %v176, %v169
    %v187 = vmul.f32 %v176, %v170
    %v188 = vmul.f32 %v176, %v171
    %v189 = vmul.f32 %v176, %v172
    %v190 = vmul.f32 %v176, %v173
    %v191 = vmul.f32 %v176, %v174
    %v192 = vmul.f32 %v176, %v175
    %v193 = vadd.f32 %v141, %v177
    %v194 = vadd.f32 %v142, %v178
    %v195 = vadd.f32 %v143, %v179
    %v196 = vadd.f32 %v144, %v180
    %v197 = vadd.f32 %v145, %v181
    %v198 = vadd.f32 %v146, %v182
    %v199 = vadd.f32 %v147, %v183
    %v200 = vadd.f32 %v148, %v184
    %v201 = vadd.f32 %v149, %v185
    %v202 = vadd.f32 %v150, %v186
    %v203 = vadd.f32 %v151, %v187
    %v204 = vadd.f32 %v152, %v188
    %v205 = vadd.f32 %v153, %v189
    %v206 = vadd.f32 %v154, %v190
    %v207 = vadd.f32 %v155, %v191
    %v208 = vadd.f32 %v156, %v192
    %s209 = sld [smem:[#allocation2 + $0x8]]
    %s210 = smul.f32 %s209, %s65
    %s211 = scalar_lea.vmem [#allocation7], 256
    %v212 = vld [vmem:[%s211] sm:$0xff]
    %v213 = vld [vmem:[%s211 + $0x8] sm:$0xff]
    %v214 = vld [vmem:[%s211 + $0x10] sm:$0xff]
    %v215 = vld [vmem:[%s211 + $0x18] sm:$0xff]
    %v216 = vld [vmem:[%s211 + $0x20] sm:$0xff]
    %v217 = vld [vmem:[%s211 + $0x28] sm:$0xff]
    %v218 = vld [vmem:[%s211 + $0x30] sm:$0xff]
    %v219 = vld [vmem:[%s211 + $0x38] sm:$0xff]
    %v220 = vld [vmem:[%s211 + $0x40] sm:$0xff]
    %v221 = vld [vmem:[%s211 + $0x48] sm:$0xff]
    %v222 = vld [vmem:[%s211 + $0x50] sm:$0xff]
    %v223 = vld [vmem:[%s211 + $0x58] sm:$0xff]
    %v224 = vld [vmem:[%s211 + $0x60] sm:$0xff]
    %v225 = vld [vmem:[%s211 + $0x68] sm:$0xff]
    %v226 = vld [vmem:[%s211 + $0x70] sm:$0xff]
    %v227 = vld [vmem:[%s211 + $0x78] sm:$0xff]
    %v228 = vstv %s210
    %v229 = vmul.f32 %v228, %v212
    %v230 = vmul.f32 %v228, %v213
    %v231 = vmul.f32 %v228, %v214
    %v232 = vmul.f32 %v228, %v215
    %v233 = vmul.f32 %v228, %v216
    %v234 = vmul.f32 %v228, %v217
    %v235 = vmul.f32 %v228, %v218
    %v236 = vmul.f32 %v228, %v219
    %v237 = vmul.f32 %v228, %v220
    %v238 = vmul.f32 %v228, %v221
    %v239 = vmul.f32 %v228, %v222
    %v240 = vmul.f32 %v228, %v223
    %v241 = vmul.f32 %v228, %v224
    %v242 = vmul.f32 %v228, %v225
    %v243 = vmul.f32 %v228, %v226
    %v244 = vmul.f32 %v228, %v227
    %v245 = vadd.f32 %v193, %v229
    %v246 = vadd.f32 %v194, %v230
    %v247 = vadd.f32 %v195, %v231
    %v248 = vadd.f32 %v196, %v232
    %v249 = vadd.f32 %v197, %v233
    %v250 = vadd.f32 %v198, %v234
    %v251 = vadd.f32 %v199, %v235
    %v252 = vadd.f32 %v200, %v236
    %v253 = vadd.f32 %v201, %v237
    %v254 = vadd.f32 %v202, %v238
    %v255 = vadd.f32 %v203, %v239
    %v256 = vadd.f32 %v204, %v240
    %v257 = vadd.f32 %v205, %v241
    %v258 = vadd.f32 %v206, %v242
    %v259 = vadd.f32 %v207, %v243
    %v260 = vadd.f32 %v208, %v244
    %s261 = sld [smem:[#allocation2 + $0x9]]
    %s262 = smul.f32 %s261, %s65
    %v263 = vld [vmem:[%s5] sm:$0x1]
    %v264 = vstv %s262
    %v265 = vmul.f32 %v264, %v263
    %s266 = sld [smem:[#allocation2 + $0xa]]
    %s267 = smul.f32 %s266, %s65
    %s268 = scalar_lea.vmem %s5, 1
    %v269 = vld [vmem:[%s268] sm:$0x1]
    %v270 = vstv %s267
    %v271 = vmul.f32 %v270, %v269
    %v272 = vadd.f32 %v265, %v271
    %s273 = sld [smem:[#allocation2 + $0xb]]
    %s274 = smul.f32 %s273, %s65
    %s275 = scalar_lea.vmem %s5, 2
    %v276 = vld [vmem:[%s275] sm:$0x1]
    %v277 = vstv %s274
    %v278 = vmul.f32 %v277, %v276
    %v279 = vadd.f32 %v272, %v278
    %v280 = vld [vmem:[%s1] sm:$0xff]
    %v282 = vlaneseq
    %v283 = vshrl.u32 %v282, 7
    %v284 = vsub.s32 0, %v283
    %v285 = vrot.slane %v121, %v284
    %vm287 = vcmask 261120
    %v289 = vsel %vm287, %v280, 0
    %291 = vmatprep.subr.mxu0 0.0
    %292 = vmatpush1.msra.mxu0 %v102
    %293 = vmatprep.subr.mxu0 0.0
    %294 = vmatpush1.msra.mxu0 %v103
    %295 = vmatprep.subr.mxu0 0.0
    %296 = vmatpush1.msra.mxu0 %v104
    %297 = vmatprep.subr.mxu0 0.0
    %298 = vmatpush1.msra.mxu0 %v105
    %299 = vmatprep.subr.mxu0 0.0
    %300 = vmatpush1.msra.mxu0 0.0
    %301 = vmatprep.subr.mxu0 0.0
    %302 = vmatpush1.msra.mxu0 0.0
    %303 = vmatprep.subr.mxu0 0.0
    %304 = vmatpush1.msra.mxu0 0.0
    %305 = vmatprep.subr.mxu0 0.0
    %306 = vmatpush1.msra.mxu0 0.0
    %307 = vmatprep.subr.mxu0 0.0
    %308 = vmatpush1.msra.mxu0 0.0
    %309 = vmatprep.subr.mxu0 0.0
    %310 = vmatpush1.msra.mxu0 0.0
    %311 = vmatprep.subr.mxu0 0.0
    %312 = vmatpush1.msra.mxu0 0.0
    %313 = vmatprep.subr.mxu0 0.0
    %314 = vmatpush1.msra.mxu0 0.0
    %315 = vmatprep.subr.mxu0 0.0
    %316 = vmatpush1.msra.mxu0 0.0
    %317 = vmatprep.subr.mxu0 0.0
    %318 = vmatpush1.msra.mxu0 0.0
    %319 = vmatprep.subr.mxu0 0.0
    %320 = vmatpush1.msra.mxu0 0.0
    %321 = vmatprep.subr.mxu0 0.0
    %322 = vmatpush1.msra.mxu0 0.0
    %323 = vmatprep.subr.mxu0 0.0
    %324 = vmatpush1.msra.mxu0 0.0
    %325 = vmatprep.subr.mxu0 0.0
    %326 = vmatpush1.msra.mxu0 0.0
    %327 = vmatprep.subr.mxu0 0.0
    %328 = vmatpush1.msra.mxu0 0.0
    %329 = vmatprep.subr.mxu0 0.0
    %330 = vmatpush1.msra.mxu0 0.0
    %331 = vmatprep.subr.mxu0 0.0
    %332 = vmatpush1.msra.mxu0 0.0
    %333 = vmatprep.subr.mxu0 0.0
    %334 = vmatpush1.msra.mxu0 0.0
    %335 = vmatprep.subr.mxu0 0.0
    %336 = vmatpush1.msra.mxu0 0.0
    %337 = vmatprep.subr.mxu0 0.0
    %338 = vmatpush1.msra.mxu0 0.0
    %339 = vmatprep.subr.mxu0 0.0
    %340 = vmatpush1.msra.mxu0 0.0
    %341 = vmatprep.subr.mxu0 0.0
    %342 = vmatpush1.msra.mxu0 0.0
    %343 = vmatprep.subr.mxu0 0.0
    %344 = vmatpush1.msra.mxu0 0.0
    %345 = vmatprep.subr.mxu0 0.0
    %346 = vmatpush1.msra.mxu0 0.0
    %347 = vmatprep.subr.mxu0 0.0
    %348 = vmatpush1.msra.mxu0 0.0
    %349 = vmatprep.subr.mxu0 0.0
    %350 = vmatpush1.msra.mxu0 0.0
    %351 = vmatprep.subr.mxu0 0.0
    %352 = vmatpush1.msra.mxu0 0.0
    %353 = vmatprep.subr.mxu0 0.0
    %354 = vmatpush1.msra.mxu0 0.0
    %355 = vmatprep.mubr.f32.mxu0 0.0
    %356 = vmatmul.mubr.f32.gmra.mrb[0].mxu0 %v289
    %v357 = vpop.f32.mrb[0].mxu0
    %v358 = vadd.f32 %v285, %v357
    %v359 = vpop.f32.mrb[0].mxu0
    %360 = vdwg.mxu0
    %v361 = vmax.f32 %v358, 0.0
    %v363 = vlaneseq
    %v364 = vshrl.u32 %v363, 7
    %v365 = vsub.s32 0, %v364
    %v366 = vrot.slane %v279, %v365
    %368 = vmatprep.subr.mxu0 0.0
    %369 = vmatpush1.msra.mxu0 %v245
    %370 = vmatprep.subr.mxu0 0.0
    %371 = vmatpush1.msra.mxu0 %v246
    %372 = vmatprep.subr.mxu0 0.0
    %373 = vmatpush1.msra.mxu0 %v247
    %374 = vmatprep.subr.mxu0 0.0
    %375 = vmatpush1.msra.mxu0 %v248
    %376 = vmatprep.subr.mxu0 0.0
    %377 = vmatpush1.msra.mxu0 %v249
    %378 = vmatprep.subr.mxu0 0.0
    %379 = vmatpush1.msra.mxu0 %v250
    %380 = vmatprep.subr.mxu0 0.0
    %381 = vmatpush1.msra.mxu0 %v251
    %382 = vmatprep.subr.mxu0 0.0
    %383 = vmatpush1.msra.mxu0 %v252
    %384 = vmatprep.subr.mxu0 0.0
    %385 = vmatpush1.msra.mxu0 %v253
    %386 = vmatprep.subr.mxu0 0.0
    %387 = vmatpush1.msra.mxu0 %v254
    %388 = vmatprep.subr.mxu0 0.0
    %389 = vmatpush1.msra.mxu0 %v255
    %390 = vmatprep.subr.mxu0 0.0
    %391 = vmatpush1.msra.mxu0 %v256
    %392 = vmatprep.subr.mxu0 0.0
    %393 = vmatpush1.msra.mxu0 %v257
    %394 = vmatprep.subr.mxu0 0.0
    %395 = vmatpush1.msra.mxu0 %v258
    %396 = vmatprep.subr.mxu0 0.0
    %397 = vmatpush1.msra.mxu0 %v259
    %398 = vmatprep.subr.mxu0 0.0
    %399 = vmatpush1.msra.mxu0 %v260
    %400 = vmatprep.subr.mxu0 0.0
    %401 = vmatpush1.msra.mxu0 0.0
    %402 = vmatprep.subr.mxu0 0.0
    %403 = vmatpush1.msra.mxu0 0.0
    %404 = vmatprep.subr.mxu0 0.0
    %405 = vmatpush1.msra.mxu0 0.0
    %406 = vmatprep.subr.mxu0 0.0
    %407 = vmatpush1.msra.mxu0 0.0
    %408 = vmatprep.subr.mxu0 0.0
    %409 = vmatpush1.msra.mxu0 0.0
    %410 = vmatprep.subr.mxu0 0.0
    %411 = vmatpush1.msra.mxu0 0.0
    %412 = vmatprep.subr.mxu0 0.0
    %413 = vmatpush1.msra.mxu0 0.0
    %414 = vmatprep.subr.mxu0 0.0
    %415 = vmatpush1.msra.mxu0 0.0
    %416 = vmatprep.subr.mxu0 0.0
    %417 = vmatpush1.msra.mxu0 0.0
    %418 = vmatprep.subr.mxu0 0.0
    %419 = vmatpush1.msra.mxu0 0.0
    %420 = vmatprep.subr.mxu0 0.0
    %421 = vmatpush1.msra.mxu0 0.0
    %422 = vmatprep.subr.mxu0 0.0
    %423 = vmatpush1.msra.mxu0 0.0
    %424 = vmatprep.subr.mxu0 0.0
    %425 = vmatpush1.msra.mxu0 0.0
    %426 = vmatprep.subr.mxu0 0.0
    %427 = vmatpush1.msra.mxu0 0.0
    %428 = vmatprep.subr.mxu0 0.0
    %429 = vmatpush1.msra.mxu0 0.0
    %430 = vmatprep.subr.mxu0 0.0
    %431 = vmatpush1.msra.mxu0 0.0
    %432 = vmatprep.mubr.f32.mxu0 0.0
    %433 = vmatmul.mubr.f32.gmra.mrb[0].mxu0 %v361
    %v434 = vpop.f32.mrb[0].mxu0
    %v435 = vadd.f32 %v366, %v434
    %v436 = vpop.f32.mrb[0].mxu0
    %437 = vdwg.mxu0
    %438 = vst [vmem:[#allocation9] sm:$0xff] %v435
    // Predicated region
    $region38: #{_forward.1} parent=1 // pred_check
      _
    $region39: #{_forward.1} parent=1 // pred_check_branch
      %440 = sbr.rel (0) target = $region41
    $region40: #{_forward.1} parent=1 // pred_region
      %s442 = ssub.s32 128, 128
      %443 = vsyncadd [#allocation4], %s442
      %s445 = sshll.u32 [#allocation9], 4
      %s446 = int_to_ptr.vmem [resolvable:$true] %s445
      %448 = dma.vmem_to_hbm [thread:$0]  %s446, 128, %s6, [#allocation4]
    $region41: #{_forward.1} parent=1 // pred_fallthru
      _
    // Predicated region
    $region42: #{_forward.1} parent=1 // pred_check
      _
    $region43: #{_forward.1} parent=1 // pred_check_branch
      %450 = sbr.rel (0) target = $region45
    $region44: #{_forward.1} parent=1 // pred_region
      %451 = dma.done [#allocation4], 128
    $region45: #{_forward.1} parent=1 // pred_fallthru
      _
    %452 = vsyncpa [#allocation3], 1
    %453 = vsyncpa [#allocation8], 1
    %454 = vsyncpa [#allocation4], 1
    %455 = vsyncpa [#allocation5], 1

</llo_original>
